<compile_context>
chip_gen: v7x
topology: tpu7x:2x2x1
jax: 0.10.0
libtpu: 0.0.40
codegen_flags: <defaults>
</compile_context>

<pallas_src>
import jax
import jax.numpy as jnp
from jax.experimental import pallas as pl
from jax.experimental.pallas import tpu as pltpu


def _round_up(x, m):
    return ((x + m - 1) // m) * m


def _regressor_kernel(x_ref, w1_ref, b1_ref, w2_ref, b2_ref, o_ref):
    # x: (TB, F) f32; w1: (F, Hp); b1: (1, Hp); w2: (Hp, Cp); b2: (1, Cp); o: (TB, Cp)
    # Dropout(0.2) layers are identity in eval mode.

    # Cast activations to the matmul dtype in-kernel (no extra HBM pass in the wrapper).
    x = x_ref[...].astype(w1_ref.dtype)

    # Linear-1 with BatchNorm + bias pre-folded into w1/b1 (MXU, f32 accumulate).
    h = jnp.dot(x, w1_ref[...], preferred_element_type=jnp.float32)
    h = jnp.maximum(h + b1_ref[...], 0.0)            # bias + ReLU in f32 (VPU)

    # Linear-2 over the lane-dense (128-padded) hidden and class dims.
    z = jnp.dot(h.astype(w2_ref.dtype), w2_ref[...],
                preferred_element_type=jnp.float32)
    z = z + b2_ref[...]

    # sigmoid(z) = 0.5 * (1 + tanh(z/2)): a single EUP op, numerically stable.
    o_ref[...] = 0.5 * jnp.tanh(0.5 * z) + 0.5


def prepare_params(params, *, matmul_dtype=jnp.bfloat16, eps=1e-5, lane=128):
    """Fold BN + bias into the weights and pad H and C to lane-dense widths.

    Call once at model-load time (not per forward call)."""
    F, H = params["w1"].shape
    C = params["w2"].shape[1]
    Hp = _round_up(H, lane)
    Cp = _round_up(C, lane)

    # Fold eval-mode BatchNorm and the first bias:
    #   (x @ w1 + b1) * s + t == x @ (w1 * s) + (b1 * s + t),  s = gamma/sqrt(var+eps)
    s = params["bn_gamma"] * jax.lax.rsqrt(params["bn_var"] + eps)          # (H,)
    t = params["bn_beta"] - params["bn_mean"] * s                           # (H,)
    w1f = params["w1"] * s[None, :]                                         # (F, H)
    b1f = params["b1"] * s + t                                              # (H,)

    # Zero-pad H and C to 128 multiples: full MXU columns, packed bf16 intermediate,
    # unmasked vst on the output. Padded hidden columns produce ReLU(0)=0 and hit
    # zero rows of w2, so the result is unchanged.
    w1p = jnp.zeros((F, Hp), jnp.float32).at[:, :H].set(w1f).astype(matmul_dtype)
    b1p = jnp.zeros((1, Hp), jnp.float32).at[0, :H].set(b1f)
    w2p = jnp.zeros((Hp, Cp), jnp.float32).at[:H, :C].set(params["w2"]).astype(matmul_dtype)
    b2p = jnp.zeros((1, Cp), jnp.float32).at[0, :C].set(params["b2"])

    return {"w1": w1p, "b1": b1p, "w2": w2p, "b2": b2p, "num_class": C}


def _pick_batch_tile(B, Hp):
    if B < 256:
        # Round small batches to 16 rows: clean bf16 sublane packing for the matmul
        # operands; trivial padding cost.
        TB = _round_up(max(B, 1), 16)
    else:
        # Guarantee >= 2 grid steps so dimension_semantics=("parallel",) actually
        # uses both v7x TensorCores; cap at 512 rows (amortizes ~0.35us/step).
        TB = min(512, _round_up(pl.cdiv(B, 2), 128))
    if Hp >= 2048:
        # v5e / large-H: the (TB, Hp) f32 + bf16 intermediate must stay comfortably
        # inside scoped VMEM; 256-row tiles already saturate the 4x128^2 MXU.
        TB = min(TB, 256)
    return TB


def multimodal_regressor_forward(x, prep):
    """x: (B, F) float32. prep: output of prepare_params()."""
    B, F = x.shape
    Hp = prep["w1"].shape[1]
    Cp = prep["w2"].shape[1]
    C = prep["num_class"]
    matmul_dtype = prep["w1"].dtype
    itemsize = jnp.dtype(matmul_dtype).itemsize

    TB = _pick_batch_tile(B, Hp)
    Bp = _round_up(B, TB)
    # Pad only when needed; no wrapper-side cast (the kernel casts in VMEM).
    xp = x if Bp == B else jnp.pad(x, ((0, Bp - B), (0, 0)))

    # Explicit scoped-VMEM budget: double-buffered activation/output tiles,
    # single-buffered resident weights, plus in-kernel intermediates. Clamped to
    # 64 MiB so it is valid on v7x as well as v5e/v6e.
    vmem_bytes = (
        2 * TB * F * 4              # x tile (f32, double-buffered)
        + 2 * TB * Cp * 4           # out tile (f32, double-buffered)
        + F * Hp * itemsize         # w1 (Buffered(1))
        + Hp * Cp * itemsize        # w2 (Buffered(1))
        + (Hp + Cp) * 4             # biases
        + TB * F * itemsize         # in-kernel cast of x
        + TB * Hp * (4 + itemsize)  # h (f32) + bf16 copy for matmul-2
        + TB * Cp * 4               # z
    )
    vmem_limit = min(max(int(vmem_bytes * 1.5) + (4 << 20), 32 << 20), 64 << 20)

    def resident(shape):
        # Same block index every grid step + single buffer -> weight stays resident
        # in VMEM at 1x (not 2x) its size.
        return pl.BlockSpec(shape, lambda i: (0,) * len(shape),
                            pipeline_mode=pl.Buffered(1))

    out = pl.pallas_call(
        _regressor_kernel,
        out_shape=jax.ShapeDtypeStruct((Bp, Cp), jnp.float32),
        grid=(Bp // TB,),
        in_specs=[
            pl.BlockSpec((TB, F), lambda i: (i, 0)),   # activations tiled over batch
            resident((F, Hp)),                         # folded Linear-1 weight
            resident((1, Hp)),                         # folded Linear-1/BN bias
            resident((Hp, Cp)),                        # padded Linear-2 weight
            resident((1, Cp)),                         # padded Linear-2 bias
        ],
        out_specs=pl.BlockSpec((TB, Cp), lambda i: (i, 0)),
        compiler_params=pltpu.CompilerParams(
            dimension_semantics=("parallel",),         # batch axis -> dual TC on v7x
            vmem_limit_bytes=vmem_limit,
        ),
    )(xp, prep["w1"], prep["b1"], prep["w2"], prep["b2"])

    return out[:B, :C]


def init_params(key, video_h, audio_h, text_h, fusion_h, num_class):
    F = video_h + audio_h + text_h
    ks = jax.random.split(key, 8)
    # Deterministic synthetic init (shapes match the PyTorch module); distinct keys
    # per tensor so the two Linear layers are uncorrelated.
    params = {
        # nn.Linear(F, fusion_h): weight (fusion_h, F) -> stored transposed (F, fusion_h)
        "w1": jax.random.normal(ks[0], (F, fusion_h), jnp.float32) * 0.1,
        "b1": jax.random.normal(ks[1], (fusion_h,), jnp.float32) * 0.1,
        # nn.BatchNorm1d(fusion_h) running stats / affine params
        "bn_gamma": 1.0 + 0.1 * jax.random.normal(ks[2], (fusion_h,), jnp.float32),
        "bn_beta": 0.1 * jax.random.normal(ks[3], (fusion_h,), jnp.float32),
        "bn_mean": 0.05 * jax.random.normal(ks[4], (fusion_h,), jnp.float32),
        "bn_var": jnp.abs(1.0 + 0.1 * jax.random.normal(ks[5], (fusion_h,), jnp.float32)),
        # nn.Linear(fusion_h, num_class): stored transposed (fusion_h, num_class)
        "w2": jax.random.normal(ks[6], (fusion_h, num_class), jnp.float32) * 0.1,
        "b2": jax.random.normal(ks[7], (num_class,), jnp.float32) * 0.1,
    }
    return params


def _reference(x, params):
    eps = 1e-5
    h = x @ params["w1"] + params["b1"]
    h = params["bn_gamma"] * (h - params["bn_mean"]) / jnp.sqrt(params["bn_var"] + eps) \
        + params["bn_beta"]
    h = jnp.maximum(h, 0.0)
    z = h @ params["w2"] + params["b2"]
    return jax.nn.sigmoid(z)


if __name__ == "__main__":
    # Small shapes: video=16, audio=8, text=8 -> feature=32; fusion=32; classes=4
    video_h, audio_h, text_h, fusion_h, num_class = 16, 8, 8, 32, 4
    F = video_h + audio_h + text_h

    key = jax.random.PRNGKey(0)
    kx, kx2, kp = jax.random.split(key, 3)
    params = init_params(kp, video_h, audio_h, text_h, fusion_h, num_class)

    # --- small-batch path (TB=16, batch padded 8 -> 16, grid=(1,)) ---------------
    B = 8
    x = jax.random.normal(kx, (B, F), jnp.float32)
    ref = _reference(x, params)

    # f32-matmul path. Tolerance accounts for the MXU's bf16-pass handling of f32
    # operands under default precision and the EUP tanh (no approx reciprocal used).
    prep_f32 = prepare_params(params, matmul_dtype=jnp.float32)
    out_f32 = jax.block_until_ready(multimodal_regressor_forward(x, prep_f32))
    assert out_f32.shape == (B, num_class)
    assert jnp.allclose(out_f32, ref, atol=2e-3, rtol=2e-3)

    # bf16-matmul path (recommended production config: bf16 operands, f32 accumulate).
    prep_bf16 = prepare_params(params, matmul_dtype=jnp.bfloat16)
    out_bf16 = jax.block_until_ready(multimodal_regressor_forward(x, prep_bf16))
    assert out_bf16.shape == (B, num_class)
    assert jnp.allclose(out_bf16, ref, atol=2e-2, rtol=2e-2)

    # --- multi-step path (B=384 -> TB=256, batch padded to 512, grid=(2,)) -------
    # Exercises batch tiling, resident single-buffered weights, and batch padding.
    B2 = 384
    x2 = jax.random.normal(kx2, (B2, F), jnp.float32)
    ref2 = _reference(x2, params)
    out2 = jax.block_until_ready(multimodal_regressor_forward(x2, prep_bf16))
    assert out2.shape == (B2, num_class)
    assert jnp.allclose(out2, ref2, atol=2e-2, rtol=2e-2)
    out2_f32 = jax.block_until_ready(multimodal_regressor_forward(x2, prep_f32))
    assert jnp.allclose(out2_f32, ref2, atol=2e-3, rtol=2e-3)

    # Dropout layers are identity in eval mode (implemented as such).
    # TODO(synk): training-mode Dropout(0.2) and batch-statistics BatchNorm1d not implemented.
    print("KERNEL_OK")
</pallas_src>

<mosaic_0001>
module attributes {stable_mosaic.version = 11 : i64} {
  func.func @_regressor_kernel(%arg0: i32, %arg1: memref<16x32xf32, #tpu.memory_space<vmem>>, %arg2: memref<32x128xf32, #tpu.memory_space<vmem>>, %arg3: memref<1x128xf32, #tpu.memory_space<vmem>>, %arg4: memref<128x128xf32, #tpu.memory_space<vmem>>, %arg5: memref<1x128xf32, #tpu.memory_space<vmem>>, %arg6: memref<16x128xf32, #tpu.memory_space<vmem>>) attributes {dimension_semantics = [#tpu.dimension_semantics<parallel>], iteration_bounds = array<i64: 1>, scalar_prefetch = 0 : i64, scratch_operands = 0 : i64, tpu.core_type = #tpu.core_type<tc>, window_params = [{transform_indices = @transform_0, window_bounds = array<i64: 16, 32>}, {pipeline_mode = #tpu.pipeline_mode<synchronous>, transform_indices = @transform_1, window_bounds = array<i64: 32, 128>}, {pipeline_mode = #tpu.pipeline_mode<synchronous>, transform_indices = @transform_2, window_bounds = array<i64: 1, 128>}, {pipeline_mode = #tpu.pipeline_mode<synchronous>, transform_indices = @transform_3, window_bounds = array<i64: 128, 128>}, {pipeline_mode = #tpu.pipeline_mode<synchronous>, transform_indices = @transform_4, window_bounds = array<i64: 1, 128>}, {transform_indices = @transform_5, window_bounds = array<i64: 16, 128>}]} {
    %c0 = arith.constant 0 : index
    %c0_0 = arith.constant 0 : index
    %0 = vector.load %arg1[%c0, %c0_0] : memref<16x32xf32, #tpu.memory_space<vmem>>, vector<16x32xf32>
    %c0_1 = arith.constant 0 : index
    %c0_2 = arith.constant 0 : index
    %1 = vector.load %arg2[%c0_1, %c0_2] : memref<32x128xf32, #tpu.memory_space<vmem>>, vector<32x128xf32>
    %cst = arith.constant dense<0.000000e+00> : vector<16x128xf32>
    %2 = tpu.matmul %0, %1, %cst {dimension_numbers = #tpu.dot_dimension_numbers<[1], [0], [0], [1], [0, 0, 1, 1], [], []>} : vector<16x32xf32>, vector<32x128xf32>, vector<16x128xf32> -> vector<16x128xf32>
    %c0_3 = arith.constant 0 : index
    %c0_4 = arith.constant 0 : index
    %3 = vector.load %arg3[%c0_3, %c0_4] : memref<1x128xf32, #tpu.memory_space<vmem>>, vector<1x128xf32>
    %4 = vector.broadcast %3 : vector<1x128xf32> to vector<16x128xf32>
    %5 = arith.addf %2, %4 : vector<16x128xf32>
    %cst_5 = arith.constant 0.000000e+00 : f32
    %6 = vector.broadcast %cst_5 : f32 to vector<16x128xf32>
    %7 = arith.maximumf %5, %6 : vector<16x128xf32>
    %c0_6 = arith.constant 0 : index
    %c0_7 = arith.constant 0 : index
    %8 = vector.load %arg4[%c0_6, %c0_7] : memref<128x128xf32, #tpu.memory_space<vmem>>, vector<128x128xf32>
    %cst_8 = arith.constant dense<0.000000e+00> : vector<16x128xf32>
    %9 = tpu.matmul %7, %8, %cst_8 {dimension_numbers = #tpu.dot_dimension_numbers<[1], [0], [0], [1], [0, 0, 1, 1], [], []>} : vector<16x128xf32>, vector<128x128xf32>, vector<16x128xf32> -> vector<16x128xf32>
    %c0_9 = arith.constant 0 : index
    %c0_10 = arith.constant 0 : index
    %10 = vector.load %arg5[%c0_9, %c0_10] : memref<1x128xf32, #tpu.memory_space<vmem>>, vector<1x128xf32>
    %11 = vector.broadcast %10 : vector<1x128xf32> to vector<16x128xf32>
    %12 = arith.addf %9, %11 : vector<16x128xf32>
    %cst_11 = arith.constant 5.000000e-01 : f32
    %13 = vector.broadcast %cst_11 : f32 to vector<16x128xf32>
    %14 = arith.mulf %13, %12 : vector<16x128xf32>
    %15 = math.tanh %14 : vector<16x128xf32>
    %cst_12 = arith.constant 5.000000e-01 : f32
    %16 = vector.broadcast %cst_12 : f32 to vector<16x128xf32>
    %17 = arith.mulf %16, %15 : vector<16x128xf32>
    %cst_13 = arith.constant 5.000000e-01 : f32
    %18 = vector.broadcast %cst_13 : f32 to vector<16x128xf32>
    %19 = arith.addf %17, %18 : vector<16x128xf32>
    %c0_14 = arith.constant 0 : index
    %c0_15 = arith.constant 0 : index
    %20 = vector.load %arg6[%c0_14, %c0_15] : memref<16x128xf32, #tpu.memory_space<vmem>>, vector<16x128xf32>
    tpu.vector_store %arg6[%c0_14, %c0_15], %19 {strides = array<i32>} : memref<16x128xf32, #tpu.memory_space<vmem>>, vector<16x128xf32>,
    return
  }
  func.func @transform_0(%arg0: i32) -> (i32, i32) {
    %c0_i32 = arith.constant 0 : i32
    %c0_i32_0 = arith.constant 0 : i32
    return %arg0, %c0_i32 : i32, i32
  }
  func.func @transform_1(%arg0: i32) -> (i32, i32) {
    %c0_i32 = arith.constant 0 : i32
    %c0_i32_0 = arith.constant 0 : i32
    %c0_i32_1 = arith.constant 0 : i32
    return %c0_i32, %c0_i32_0 : i32, i32
  }
  func.func @transform_2(%arg0: i32) -> (i32, i32) {
    %c0_i32 = arith.constant 0 : i32
    %c0_i32_0 = arith.constant 0 : i32
    %c0_i32_1 = arith.constant 0 : i32
    return %c0_i32, %c0_i32_0 : i32, i32
  }
  func.func @transform_3(%arg0: i32) -> (i32, i32) {
    %c0_i32 = arith.constant 0 : i32
    %c0_i32_0 = arith.constant 0 : i32
    %c0_i32_1 = arith.constant 0 : i32
    return %c0_i32, %c0_i32_0 : i32, i32
  }
  func.func @transform_4(%arg0: i32) -> (i32, i32) {
    %c0_i32 = arith.constant 0 : i32
    %c0_i32_0 = arith.constant 0 : i32
    %c0_i32_1 = arith.constant 0 : i32
    return %c0_i32, %c0_i32_0 : i32, i32
  }
  func.func @transform_5(%arg0: i32) -> (i32, i32) {
    %c0_i32 = arith.constant 0 : i32
    %c0_i32_0 = arith.constant 0 : i32
    return %arg0, %c0_i32 : i32, i32
  }
}

</mosaic_0001>

<llo_original>
// kernel: tpu_custom_call.1
$region0: #{tpu_custom_call.1}
  #allocation0 [shape = 'u32[]', space=smem, size = 0x4, offset = 0x4, fixed_abs, tag = 'smem constant byte address 0x4 - core index']
  #allocation1 [shape = 'u32[144,128]{1,0:T(1,128)}', space=vmem, size = 0x12000, scoped, tag = 'internal scratch']
  %s0 = inlined_call_operand.hbm [shape: f32[16,32], index: 0, kind: input, shape index: {}]
  %s1 = inlined_call_operand.hbm [shape: f32[32,128], index: 1, kind: input, shape index: {}]
  %s2 = inlined_call_operand.vmem [shape: f32[1,128], index: 2, kind: input, shape index: {}]
  %s3 = inlined_call_operand.hbm [shape: f32[128,128], index: 3, kind: input, shape index: {}]
  %s4 = inlined_call_operand.vmem [shape: f32[1,128], index: 4, kind: input, shape index: {}]
  %s5 = inlined_call_operand.hbm [shape: f32[16,128], index: 5, kind: output, shape index: {}]
  %s6 = sld [smem:[#allocation0]]
  $region42: #{tpu_custom_call.1} parent=0
    _
  %s8 = ssub.s32 1, %s6
  %s9 = scalar_select 0, %s8, %s6
  $region1: #{tpu_custom_call.1} parent=0
    #allocation2 [shape = 'u8[8192]{0}', space=vmem, size = 0x2000, scoped, tag = 'input window, operand 0, single buffered']
    #allocation3 [shape = 's32[1]{0}', space=sflag, size = 0x4, scoped, tag = 'scoped memory for tpu_custom_call.1']
    #allocation4 [shape = 's32[1]{0}', space=sflag, size = 0x4, scoped, tag = 'scoped memory for tpu_custom_call.1']
    #allocation5 [shape = 'u8[16384]{0}', space=vmem, size = 0x4000, scoped, tag = 'input window, operand 1, single buffered']
    #allocation6 [shape = 's32[1]{0}', space=sflag, size = 0x4, scoped, tag = 'scoped memory for tpu_custom_call.1']
    #allocation7 [shape = 'u8[65536]{0}', space=vmem, size = 0x10000, scoped, tag = 'input window, operand 3, single buffered']
    #allocation8 [shape = 'u8[8192]{0}', space=vmem, size = 0x2000, scoped, tag = 'output window, operand 0, single buffered']
    %10 = vsyncpa [#allocation3], 0
    %11 = vsyncpa [#allocation6], 0
    %12 = vsyncpa [#allocation4], 0
    // Predicated region
    $region2: #{tpu_custom_call.1} parent=1 // pred_check
      _
    $region3: #{tpu_custom_call.1} parent=1 // pred_check_branch
      %14 = sbr.rel (0) target = $region5
    $region4: #{tpu_custom_call.1} parent=1 // pred_region
      %s16 = ssub.s32 256, 256
      %17 = vsyncadd [#allocation3], %s16
      %s18 = sshll.u32 [#allocation2], 4
      %s19 = int_to_ptr.vmem [resolvable:$true] %s18
      %24 = dma.hbm_to_vmem [thread:$0]  %s0, 256, %s19, [#allocation3], 128, 128, 8
    $region5: #{tpu_custom_call.1} parent=1 // pred_fallthru
      _
    // Predicated region
    $region6: #{tpu_custom_call.1} parent=1 // pred_check
      _
    $region7: #{tpu_custom_call.1} parent=1 // pred_check_branch
      %26 = sbr.rel (0) target = $region9
    $region8: #{tpu_custom_call.1} parent=1 // pred_region
      %s28 = ssub.s32 512, 512
      %29 = vsyncadd [#allocation6], %s28
      %s30 = sshll.u32 [#allocation5], 4
      %s31 = int_to_ptr.vmem [resolvable:$true] %s30
      %36 = dma.hbm_to_vmem [thread:$0]  %s1, 512, %s31, [#allocation6], 128, 128, 8
    $region9: #{tpu_custom_call.1} parent=1 // pred_fallthru
      _
    // Predicated region
    $region10: #{tpu_custom_call.1} parent=1 // pred_check
      _
    $region11: #{tpu_custom_call.1} parent=1 // pred_check_branch
      %38 = sbr.rel (0) target = $region13
    $region12: #{tpu_custom_call.1} parent=1 // pred_region
      _
    $region13: #{tpu_custom_call.1} parent=1 // pred_fallthru
      _
    // Predicated region
    $region14: #{tpu_custom_call.1} parent=1 // pred_check
      _
    $region15: #{tpu_custom_call.1} parent=1 // pred_check_branch
      %40 = sbr.rel (0) target = $region17
    $region16: #{tpu_custom_call.1} parent=1 // pred_region
      %s42 = ssub.s32 2048, 2048
      %43 = vsyncadd [#allocation6], %s42
      %s44 = sshll.u32 [#allocation7], 4
      %s45 = int_to_ptr.vmem [resolvable:$true] %s44
      %50 = dma.hbm_to_vmem [thread:$0]  %s3, 2048, %s45, [#allocation6], 128, 128, 8
    $region17: #{tpu_custom_call.1} parent=1 // pred_fallthru
      _
    // Predicated region
    $region18: #{tpu_custom_call.1} parent=1 // pred_check
      _
    $region19: #{tpu_custom_call.1} parent=1 // pred_check_branch
      %52 = sbr.rel (0) target = $region21
    $region20: #{tpu_custom_call.1} parent=1 // pred_region
      _
    $region21: #{tpu_custom_call.1} parent=1 // pred_fallthru
      _
    // Predicated region
    $region22: #{tpu_custom_call.1} parent=1 // pred_check
      _
    $region23: #{tpu_custom_call.1} parent=1 // pred_check_branch
      %54 = sbr.rel (0) target = $region25
    $region24: #{tpu_custom_call.1} parent=1 // pred_region
      %55 = dma.done [#allocation3], 256
    $region25: #{tpu_custom_call.1} parent=1 // pred_fallthru
      _
    // Predicated region
    $region26: #{tpu_custom_call.1} parent=1 // pred_check
      _
    $region27: #{tpu_custom_call.1} parent=1 // pred_check_branch
      %57 = sbr.rel (0) target = $region29
    $region28: #{tpu_custom_call.1} parent=1 // pred_region
      %58 = dma.done [#allocation6], 512
    $region29: #{tpu_custom_call.1} parent=1 // pred_fallthru
      _
    // Predicated region
    $region30: #{tpu_custom_call.1} parent=1 // pred_check
      _
    $region31: #{tpu_custom_call.1} parent=1 // pred_check_branch
      %60 = sbr.rel (0) target = $region33
    $region32: #{tpu_custom_call.1} parent=1 // pred_region
      %61 = dma.done [#allocation6], 2048
    $region33: #{tpu_custom_call.1} parent=1 // pred_fallthru
      _
    %v62 = vld [vmem:[#allocation2] sm:$0xff]
    %v63 = vld [vmem:[#allocation2 + $0x8] sm:$0xff]
    %v64 = vld [vmem:[#allocation5] sm:$0xff]
    %v65 = vld [vmem:[#allocation5 + $0x8] sm:$0xff]
    %v66 = vld [vmem:[#allocation5 + $0x10] sm:$0xff]
    %v67 = vld [vmem:[#allocation5 + $0x18] sm:$0xff]
    %v68 = vld [vmem:[%s2] sm:$0x1]
    %v70 = vlaneseq
    %v71 = vshrl.u32 %v70, 7
    %v72 = vsub.s32 0, %v71
    %v73 = vrot.slane %v68, %v72
    %vm75 = vcmask 261120
    %v77 = vsel %vm75, %v62, 0
    %v80 = vsel %vm75, %v63, 0
    %82 = vmatprep.subr.mxu0 0.0
    %83 = vmatpush1.msra.mxu0 %v64
    %84 = vmatprep.subr.mxu0 0.0
    %85 = vmatpush1.msra.mxu0 %v65
    %86 = vmatprep.subr.mxu0 0.0
    %87 = vmatpush1.msra.mxu0 %v66
    %88 = vmatprep.subr.mxu0 0.0
    %89 = vmatpush1.msra.mxu0 %v67
    %90 = vmatprep.subr.mxu0 0.0
    %91 = vmatpush1.msra.mxu0 0.0
    %92 = vmatprep.subr.mxu0 0.0
    %93 = vmatpush1.msra.mxu0 0.0
    %94 = vmatprep.subr.mxu0 0.0
    %95 = vmatpush1.msra.mxu0 0.0
    %96 = vmatprep.subr.mxu0 0.0
    %97 = vmatpush1.msra.mxu0 0.0
    %98 = vmatprep.subr.mxu0 0.0
    %99 = vmatpush1.msra.mxu0 0.0
    %100 = vmatprep.subr.mxu0 0.0
    %101 = vmatpush1.msra.mxu0 0.0
    %102 = vmatprep.subr.mxu0 0.0
    %103 = vmatpush1.msra.mxu0 0.0
    %104 = vmatprep.subr.mxu0 0.0
    %105 = vmatpush1.msra.mxu0 0.0
    %106 = vmatprep.subr.mxu0 0.0
    %107 = vmatpush1.msra.mxu0 0.0
    %108 = vmatprep.subr.mxu0 0.0
    %109 = vmatpush1.msra.mxu0 0.0
    %110 = vmatprep.subr.mxu0 0.0
    %111 = vmatpush1.msra.mxu0 0.0
    %112 = vmatprep.subr.mxu0 0.0
    %113 = vmatpush1.msra.mxu0 0.0
    %114 = vmatprep.subr.mxu0 0.0
    %115 = vmatpush1.msra.mxu0 0.0
    %116 = vmatprep.subr.mxu0 0.0
    %117 = vmatpush1.msra.mxu0 0.0
    %118 = vmatprep.subr.mxu0 0.0
    %119 = vmatpush1.msra.mxu0 0.0
    %120 = vmatprep.subr.mxu0 0.0
    %121 = vmatpush1.msra.mxu0 0.0
    %122 = vmatprep.subr.mxu0 0.0
    %123 = vmatpush1.msra.mxu0 0.0
    %124 = vmatprep.subr.mxu0 0.0
    %125 = vmatpush1.msra.mxu0 0.0
    %126 = vmatprep.subr.mxu0 0.0
    %127 = vmatpush1.msra.mxu0 0.0
    %128 = vmatprep.subr.mxu0 0.0
    %129 = vmatpush1.msra.mxu0 0.0
    %130 = vmatprep.subr.mxu0 0.0
    %131 = vmatpush1.msra.mxu0 0.0
    %132 = vmatprep.subr.mxu0 0.0
    %133 = vmatpush1.msra.mxu0 0.0
    %134 = vmatprep.subr.mxu0 0.0
    %135 = vmatpush1.msra.mxu0 0.0
    %136 = vmatprep.subr.mxu0 0.0
    %137 = vmatpush1.msra.mxu0 0.0
    %138 = vmatprep.subr.mxu0 0.0
    %139 = vmatpush1.msra.mxu0 0.0
    %140 = vmatprep.subr.mxu0 0.0
    %141 = vmatpush1.msra.mxu0 0.0
    %142 = vmatprep.subr.mxu0 0.0
    %143 = vmatpush1.msra.mxu0 0.0
    %144 = vmatprep.subr.mxu0 0.0
    %145 = vmatpush1.msra.mxu0 0.0
    %146 = vmatprep.mubr.f32.mxu0 0.0
    %147 = vmatmul.mubr.f32.gmra.mrb[0].mxu0 %v77
    %v148 = vpop.f32.mrb[0].mxu0
    %v149 = vadd.f32 %v73, %v148
    %v150 = vpop.f32.mrb[0].mxu0
    %151 = vmatprep.mubr.f32.mxu0 0.0
    %152 = vmatmul.mubr.f32.gmra.mrb[0].mxu0 %v80
    %v153 = vpop.f32.mrb[0].mxu0
    %v154 = vadd.f32 %v73, %v153
    %v155 = vpop.f32.mrb[0].mxu0
    %156 = vdwg.mxu0
    %v157 = vmax.f32 %v149, 0.0
    %v158 = vmax.f32 %v154, 0.0
    %v159 = vld [vmem:[#allocation7] sm:$0xff]
    %v160 = vld [vmem:[#allocation7 + $0x8] sm:$0xff]
    %v161 = vld [vmem:[#allocation7 + $0x10] sm:$0xff]
    %v162 = vld [vmem:[#allocation7 + $0x18] sm:$0xff]
    %v163 = vld [vmem:[#allocation7 + $0x20] sm:$0xff]
    %v164 = vld [vmem:[#allocation7 + $0x28] sm:$0xff]
    %v165 = vld [vmem:[#allocation7 + $0x30] sm:$0xff]
    %v166 = vld [vmem:[#allocation7 + $0x38] sm:$0xff]
    %v167 = vld [vmem:[#allocation7 + $0x40] sm:$0xff]
    %v168 = vld [vmem:[#allocation7 + $0x48] sm:$0xff]
    %v169 = vld [vmem:[#allocation7 + $0x50] sm:$0xff]
    %v170 = vld [vmem:[#allocation7 + $0x58] sm:$0xff]
    %v171 = vld [vmem:[#allocation7 + $0x60] sm:$0xff]
    %v172 = vld [vmem:[#allocation7 + $0x68] sm:$0xff]
    %v173 = vld [vmem:[#allocation7 + $0x70] sm:$0xff]
    %v174 = vld [vmem:[#allocation7 + $0x78] sm:$0xff]
    %v175 = vld [vmem:[%s4] sm:$0x1]
    %v177 = vlaneseq
    %v178 = vshrl.u32 %v177, 7
    %v179 = vsub.s32 0, %v178
    %v180 = vrot.slane %v175, %v179
    %182 = vmatprep.subr.mxu0 0.0
    %183 = vmatpush1.msra.mxu0 %v159
    %184 = vmatprep.subr.mxu0 0.0
    %185 = vmatpush1.msra.mxu0 %v160
    %186 = vmatprep.subr.mxu0 0.0
    %187 = vmatpush1.msra.mxu0 %v161
    %188 = vmatprep.subr.mxu0 0.0
    %189 = vmatpush1.msra.mxu0 %v162
    %190 = vmatprep.subr.mxu0 0.0
    %191 = vmatpush1.msra.mxu0 %v163
    %192 = vmatprep.subr.mxu0 0.0
    %193 = vmatpush1.msra.mxu0 %v164
    %194 = vmatprep.subr.mxu0 0.0
    %195 = vmatpush1.msra.mxu0 %v165
    %196 = vmatprep.subr.mxu0 0.0
    %197 = vmatpush1.msra.mxu0 %v166
    %198 = vmatprep.subr.mxu0 0.0
    %199 = vmatpush1.msra.mxu0 %v167
    %200 = vmatprep.subr.mxu0 0.0
    %201 = vmatpush1.msra.mxu0 %v168
    %202 = vmatprep.subr.mxu0 0.0
    %203 = vmatpush1.msra.mxu0 %v169
    %204 = vmatprep.subr.mxu0 0.0
    %205 = vmatpush1.msra.mxu0 %v170
    %206 = vmatprep.subr.mxu0 0.0
    %207 = vmatpush1.msra.mxu0 %v171
    %208 = vmatprep.subr.mxu0 0.0
    %209 = vmatpush1.msra.mxu0 %v172
    %210 = vmatprep.subr.mxu0 0.0
    %211 = vmatpush1.msra.mxu0 %v173
    %212 = vmatprep.subr.mxu0 0.0
    %213 = vmatpush1.msra.mxu0 %v174
    %214 = vmatprep.subr.mxu0 0.0
    %215 = vmatpush1.msra.mxu0 0.0
    %216 = vmatprep.subr.mxu0 0.0
    %217 = vmatpush1.msra.mxu0 0.0
    %218 = vmatprep.subr.mxu0 0.0
    %219 = vmatpush1.msra.mxu0 0.0
    %220 = vmatprep.subr.mxu0 0.0
    %221 = vmatpush1.msra.mxu0 0.0
    %222 = vmatprep.subr.mxu0 0.0
    %223 = vmatpush1.msra.mxu0 0.0
    %224 = vmatprep.subr.mxu0 0.0
    %225 = vmatpush1.msra.mxu0 0.0
    %226 = vmatprep.subr.mxu0 0.0
    %227 = vmatpush1.msra.mxu0 0.0
    %228 = vmatprep.subr.mxu0 0.0
    %229 = vmatpush1.msra.mxu0 0.0
    %230 = vmatprep.subr.mxu0 0.0
    %231 = vmatpush1.msra.mxu0 0.0
    %232 = vmatprep.subr.mxu0 0.0
    %233 = vmatpush1.msra.mxu0 0.0
    %234 = vmatprep.subr.mxu0 0.0
    %235 = vmatpush1.msra.mxu0 0.0
    %236 = vmatprep.subr.mxu0 0.0
    %237 = vmatpush1.msra.mxu0 0.0
    %238 = vmatprep.subr.mxu0 0.0
    %239 = vmatpush1.msra.mxu0 0.0
    %240 = vmatprep.subr.mxu0 0.0
    %241 = vmatpush1.msra.mxu0 0.0
    %242 = vmatprep.subr.mxu0 0.0
    %243 = vmatpush1.msra.mxu0 0.0
    %244 = vmatprep.subr.mxu0 0.0
    %245 = vmatpush1.msra.mxu0 0.0
    %246 = vmatprep.mubr.f32.mxu0 0.0
    %247 = vmatmul.mubr.f32.gmra.mrb[0].mxu0 %v157
    %v248 = vpop.f32.mrb[0].mxu0
    %v249 = vadd.f32 %v180, %v248
    %v250 = vpop.f32.mrb[0].mxu0
    %251 = vmatprep.mubr.f32.mxu0 0.0
    %252 = vmatmul.mubr.f32.gmra.mrb[0].mxu0 %v158
    %v253 = vpop.f32.mrb[0].mxu0
    %v254 = vadd.f32 %v180, %v253
    %v255 = vpop.f32.mrb[0].mxu0
    %256 = vdwg.mxu0
    %v257 = vmul.f32 %v249, 0.5
    %v258 = vmul.f32 %v254, 0.5
    %v259 = vtanh.pop %v257
    %v260 = vtanh.pop %v258
    %v261 = vmul.f32 %v259, 0.5
    %v262 = vmul.f32 %v260, 0.5
    %v263 = vadd.f32 %v261, 0.5
    %v264 = vadd.f32 %v262, 0.5
    %265 = vst [vmem:[#allocation8] sm:$0xff] %v263
    %266 = vst [vmem:[#allocation8 + $0x8] sm:$0xff] %v264
    // Predicated region
    $region34: #{tpu_custom_call.1} parent=1 // pred_check
      _
    $region35: #{tpu_custom_call.1} parent=1 // pred_check_branch
      %268 = sbr.rel (0) target = $region37
    $region36: #{tpu_custom_call.1} parent=1 // pred_region
      %s270 = ssub.s32 256, 256
      %271 = vsyncadd [#allocation4], %s270
      %s272 = sshll.u32 [#allocation8], 4
      %s273 = int_to_ptr.vmem [resolvable:$true] %s272
      %278 = dma.vmem_to_hbm [thread:$0]  %s273, 256, %s5, [#allocation4], 128, 128, 8
    $region37: #{tpu_custom_call.1} parent=1 // pred_fallthru
      _
    // Predicated region
    $region38: #{tpu_custom_call.1} parent=1 // pred_check
      _
    $region39: #{tpu_custom_call.1} parent=1 // pred_check_branch
      %280 = sbr.rel (0) target = $region41
    $region40: #{tpu_custom_call.1} parent=1 // pred_region
      %281 = dma.done [#allocation4], 256
    $region41: #{tpu_custom_call.1} parent=1 // pred_fallthru
      _
    %282 = vsyncpa [#allocation3], 1
    %283 = vsyncpa [#allocation6], 1
    %284 = vsyncpa [#allocation4], 1

</llo_original>
